<compile_context>
chip_gen: v5e
topology: v5e:2x2
jax: 0.10.0
libtpu: 0.0.40
codegen_flags: <defaults>
</compile_context>

<pallas_src>
import math
import functools

import jax
import jax.numpy as jnp
from jax.experimental import pallas as pl
from jax.experimental.pallas import tpu as pltpu


_LANE = 128
_SUBLANE = 8
# Per-step working set (double-buffered x/W/bias/out tiles) is kept under this budget,
# which fits comfortably inside the scoped-VMEM limit requested below on every
# generation (v5e 16->32 MiB raised, v6e 32/128 MiB, v7x 32/64 MiB).
_VMEM_BUDGET_BYTES = 20 * 1024 * 1024
_VMEM_LIMIT_BYTES = 32 * 1024 * 1024
_MAX_TM = 256    # row tile cap (multiple of 8)
_MAX_TN = 2048   # column tile cap (multiple of 128)


def _hyper_linear_kernel(x_ref, w_ref, b_ref, o_ref):
    # Hot path: MXU matmul with f32 accumulation, bias add on the f32 accumulator (VPU).
    acc = jnp.dot(x_ref[...], w_ref[...], preferred_element_type=jnp.float32)
    o_ref[...] = (acc + b_ref[...].astype(jnp.float32)).astype(o_ref.dtype)


def _round_up(v, m):
    return (v + m - 1) // m * m


def _pick_tiles(M, K, N, x_bytes, w_bytes, o_bytes):
    """Pick (tm, tn) so the double-buffered working set stays under the VMEM budget."""
    tm = M if M <= _MAX_TM else _MAX_TM
    if N < _LANE:
        # Lane dim equal to the full array dim is allowed by Mosaic.
        return tm, N
    # Solve for the widest multiple-of-128 tn under the budget:
    #   2*tm*K*x_bytes + 2*K*tn*w_bytes + 2*tm*tn*o_bytes + 2*tn*4  <=  budget
    avail = _VMEM_BUDGET_BYTES - 2 * tm * K * x_bytes
    denom = 2 * (K * w_bytes + tm * o_bytes + 4)
    tn = max(_LANE, min(_MAX_TN, (avail // denom) // _LANE * _LANE))
    # No point in a tile wider than the (lane-rounded) output width.
    return tm, min(tn, _round_up(N, _LANE))


@functools.partial(jax.jit, static_argnames=("tm", "tn", "compute_dtype"))
def hyper_linear(x, W, b, *, tm=None, tn=None, compute_dtype=None):
    """y = x @ W + b via a Pallas TPU kernel.

    x: (M, K); W: (K, N); b: (N,).  compute_dtype (e.g. jnp.bfloat16) optionally
    casts x/W for the HBM stream; accumulation stays in f32 and the output keeps
    x's original dtype.
    """
    M, K = x.shape
    K2, N = W.shape
    assert K == K2, "x / W inner dims must match"
    assert b.shape == (N,), "bias must have shape (N,)"

    out_dtype = x.dtype
    if compute_dtype is not None:
        x = x.astype(compute_dtype)
        W = W.astype(compute_dtype)

    dtm, dtn = _pick_tiles(M, K, N,
                           x.dtype.itemsize, W.dtype.itemsize,
                           jnp.dtype(out_dtype).itemsize)
    tm = dtm if tm is None else tm
    tn = dtn if tn is None else tn

    # Mosaic (8, 128) tiling rule: each of the last two block dims must be divisible
    # by (8, 128) respectively, or equal the full array dim.
    if tm != M and tm % _SUBLANE != 0:
        raise ValueError(f"tm={tm} must be a multiple of {_SUBLANE} or equal M={M}")
    if tn != N and tn % _LANE != 0:
        raise ValueError(f"tn={tn} must be a multiple of {_LANE} or equal N={N}")

    b2d = b.reshape(1, N)  # glue reshape so bias broadcasts over rows in-kernel

    # N tiles on the outer (parallel, megacore-shardable) axis, M tiles innermost so
    # each W column block is DMA'd from HBM exactly once (its block index is constant
    # across the inner axis); only the tiny x tile is re-fetched.
    grid = (pl.cdiv(N, tn), pl.cdiv(M, tm))

    cost = pl.CostEstimate(
        flops=2 * M * K * N,
        transcendentals=0,
        bytes_accessed=(M * K * x.dtype.itemsize
                        + K * N * W.dtype.itemsize
                        + N * b.dtype.itemsize
                        + M * N * jnp.dtype(out_dtype).itemsize),
    )

    return pl.pallas_call(
        _hyper_linear_kernel,
        out_shape=jax.ShapeDtypeStruct((M, N), out_dtype),
        grid_spec=pltpu.PrefetchScalarGridSpec(
            num_scalar_prefetch=0,
            grid=grid,
            in_specs=[
                pl.BlockSpec((tm, K), lambda j, i: (i, 0)),   # x tile (full K)
                pl.BlockSpec((K, tn), lambda j, i: (0, j)),   # W tile: constant over i
                pl.BlockSpec((1, tn), lambda j, i: (0, j)),   # bias tile
            ],
            out_specs=pl.BlockSpec((tm, tn), lambda j, i: (i, j)),
        ),
        compiler_params=pltpu.CompilerParams(
            dimension_semantics=("parallel", "parallel"),
            vmem_limit_bytes=_VMEM_LIMIT_BYTES,
        ),
        cost_estimate=cost,
    )(x, W, b2d)


def init_hyper_linear_params(key, dim_in, dim_in_main, dim_out_main,
                             bias=False, predict_bias=False, dtype=jnp.float32):
    """Deterministic hyperfan-in init matching the PyTorch module's __init__."""
    if not bias:
        w_shape = (dim_in, dim_in_main * dim_out_main)
        b_shape = (dim_in_main * dim_out_main,)
        bound = math.sqrt(1.0 / (2 ** predict_bias * dim_in * dim_in_main))
    else:
        w_shape = (dim_in, dim_out_main)
        b_shape = (dim_out_main,)
        bound = math.sqrt(1.0 / (2 * dim_in))
    W = jax.random.uniform(key, w_shape, dtype=dtype, minval=-bound, maxval=bound)
    b = jnp.zeros(b_shape, dtype=dtype)
    return W, b


if __name__ == "__main__":
    # Small shapes consistent with the module's forward (bias=False path).
    dim_in = 32          # hypernetwork embedding dim (K)
    dim_in_main = 16     # main-net fan-in
    dim_out_main = 32    # main-net fan-out  -> N = 512 (lane aligned)
    batch = 8            # M

    key = jax.random.PRNGKey(0)
    k_w, k_x = jax.random.split(key)

    W, b = init_hyper_linear_params(k_w, dim_in, dim_in_main, dim_out_main,
                                    bias=False, predict_bias=False)
    x = jax.random.normal(k_x, (batch, dim_in), dtype=jnp.float32)

    y_ref = x @ W + b

    # 1) Auto-picked tiles (VMEM-budgeted, lane-dense).
    y = jax.block_until_ready(hyper_linear(x, W, b))
    assert y.shape == (batch, dim_in_main * dim_out_main)
    assert jnp.allclose(y, y_ref, atol=1e-5, rtol=1e-5)

    # 2) Explicit small tiles: multi-step grid exercises the W-streamed-once layout.
    y2 = jax.block_until_ready(hyper_linear(x, W, b, tm=8, tn=128))
    assert jnp.allclose(y2, y_ref, atol=1e-5, rtol=1e-5)

    # 3) bf16 streaming path (halves the dominant W HBM bytes), f32 accumulation.
    y3 = jax.block_until_ready(hyper_linear(x, W, b, compute_dtype=jnp.bfloat16))
    assert jnp.allclose(y3, y_ref, atol=3e-2, rtol=3e-2)

    print("KERNEL_OK")
</pallas_src>

<mosaic_0001>
module attributes {stable_mosaic.version = 11 : i64} {
  func.func @_hyper_linear_kernel(%arg0: i32, %arg1: i32, %arg2: memref<8x32xf32, #tpu.memory_space<vmem>>, %arg3: memref<32x512xf32, #tpu.memory_space<vmem>>, %arg4: memref<1x512xf32, #tpu.memory_space<vmem>>, %arg5: memref<8x512xf32, #tpu.memory_space<vmem>>) attributes {dimension_semantics = [#tpu.dimension_semantics<parallel>, #tpu.dimension_semantics<parallel>], iteration_bounds = array<i64: 1, 1>, scalar_prefetch = 0 : i64, scratch_operands = 0 : i64, tpu.core_type = #tpu.core_type<tc>, window_params = [{transform_indices = @transform_0, window_bounds = array<i64: 8, 32>}, {transform_indices = @transform_1, window_bounds = array<i64: 32, 512>}, {transform_indices = @transform_2, window_bounds = array<i64: 1, 512>}, {transform_indices = @transform_3, window_bounds = array<i64: 8, 512>}]} {
    %c0 = arith.constant 0 : index
    %c0_0 = arith.constant 0 : index
    %0 = vector.load %arg2[%c0, %c0_0] : memref<8x32xf32, #tpu.memory_space<vmem>>, vector<8x32xf32>
    %c0_1 = arith.constant 0 : index
    %c0_2 = arith.constant 0 : index
    %1 = vector.load %arg3[%c0_1, %c0_2] : memref<32x512xf32, #tpu.memory_space<vmem>>, vector<32x512xf32>
    %cst = arith.constant dense<0.000000e+00> : vector<8x512xf32>
    %2 = tpu.matmul %0, %1, %cst {dimension_numbers = #tpu.dot_dimension_numbers<[1], [0], [0], [1], [0, 0, 1, 1], [], []>} : vector<8x32xf32>, vector<32x512xf32>, vector<8x512xf32> -> vector<8x512xf32>
    %c0_3 = arith.constant 0 : index
    %c0_4 = arith.constant 0 : index
    %3 = vector.load %arg4[%c0_3, %c0_4] : memref<1x512xf32, #tpu.memory_space<vmem>>, vector<1x512xf32>
    %4 = vector.broadcast %3 : vector<1x512xf32> to vector<8x512xf32>
    %5 = arith.addf %2, %4 : vector<8x512xf32>
    %c0_5 = arith.constant 0 : index
    %c0_6 = arith.constant 0 : index
    %6 = vector.load %arg5[%c0_5, %c0_6] : memref<8x512xf32, #tpu.memory_space<vmem>>, vector<8x512xf32>
    tpu.vector_store %arg5[%c0_5, %c0_6], %5 {strides = array<i32>} : memref<8x512xf32, #tpu.memory_space<vmem>>, vector<8x512xf32>,
    return
  }
  func.func @transform_0(%arg0: i32, %arg1: i32) -> (i32, i32) {
    %c0_i32 = arith.constant 0 : i32
    %c0_i32_0 = arith.constant 0 : i32
    return %arg1, %c0_i32 : i32, i32
  }
  func.func @transform_1(%arg0: i32, %arg1: i32) -> (i32, i32) {
    %c0_i32 = arith.constant 0 : i32
    %c0_i32_0 = arith.constant 0 : i32
    return %c0_i32, %arg0 : i32, i32
  }
  func.func @transform_2(%arg0: i32, %arg1: i32) -> (i32, i32) {
    %c0_i32 = arith.constant 0 : i32
    %c0_i32_0 = arith.constant 0 : i32
    return %c0_i32, %arg0 : i32, i32
  }
  func.func @transform_3(%arg0: i32, %arg1: i32) -> (i32, i32) {
    %c0_i32 = arith.constant 0 : i32
    return %arg1, %arg0 : i32, i32
  }
}

</mosaic_0001>

<llo_original>
// kernel: hyper_linear.1
$region0: #{hyper_linear.1}
  #allocation0 [shape = 'u32[]', space=smem, size = 0x4, offset = 0x4, fixed_abs, tag = 'smem constant byte address 0x4 - core index']
  #allocation1 [shape = 'u32[72,128]{1,0:T(1,128)}', space=vmem, size = 0x9000, scoped, tag = 'internal scratch']
  %s0 = inlined_call_operand.hbm [shape: f32[8,32], index: 0, kind: input, shape index: {}]
  %s1 = inlined_call_operand.hbm [shape: f32[32,512], index: 1, kind: input, shape index: {}]
  %s2 = inlined_call_operand.hbm [shape: f32[1,512], index: 2, kind: input, shape index: {}]
  %s3 = inlined_call_operand.hbm [shape: f32[8,512], index: 3, kind: output, shape index: {}]
  %s4 = sld [smem:[#allocation0]]
  $region34: #{hyper_linear.1} parent=0
    _
  %s6 = ssub.s32 1, %s4
  %s7 = scalar_select 0, %s6, %s4
  $region1: #{hyper_linear.1} parent=0
    #allocation2 [shape = 'u8[4096]{0}', space=vmem, size = 0x1000, scoped, tag = 'input window, operand 0, single buffered']
    #allocation3 [shape = 's32[1]{0}', space=sflag, size = 0x4, scoped, tag = 'scoped memory for hyper_linear.1']
    #allocation4 [shape = 's32[1]{0}', space=sflag, size = 0x4, scoped, tag = 'scoped memory for hyper_linear.1']
    #allocation5 [shape = 'u8[65536]{0}', space=vmem, size = 0x10000, scoped, tag = 'input window, operand 1, single buffered']
    #allocation6 [shape = 's32[1]{0}', space=sflag, size = 0x4, scoped, tag = 'scoped memory for hyper_linear.1']
    #allocation7 [shape = 'u8[2048]{0}', space=vmem, size = 0x800, scoped, tag = 'input window, operand 2, single buffered']
    #allocation8 [shape = 'u8[16384]{0}', space=vmem, size = 0x4000, scoped, tag = 'output window, operand 0, single buffered']
    %8 = vsyncpa [#allocation3], 0
    %9 = vsyncpa [#allocation6], 0
    %10 = vsyncpa [#allocation4], 0
    // Predicated region
    $region2: #{hyper_linear.1} parent=1 // pred_check
      _
    $region3: #{hyper_linear.1} parent=1 // pred_check_branch
      %12 = sbr.rel (0) target = $region5
    $region4: #{hyper_linear.1} parent=1 // pred_region
      %14 = vsyncadd [#allocation3], 0
      %s16 = sshll.u32 %s0, 4
      %s17 = int_to_ptr.hbm [resolvable:$true] %s16
      %s18 = sshll.u32 [#allocation2], 4
      %s19 = int_to_ptr.vmem [resolvable:$true] %s18
      %21 = dma.hbm_to_vmem [thread:$0]  %s17, 128, %s19, [#allocation3]
    $region5: #{hyper_linear.1} parent=1 // pred_fallthru
      _
    // Predicated region
    $region6: #{hyper_linear.1} parent=1 // pred_check
      _
    $region7: #{hyper_linear.1} parent=1 // pred_check_branch
      %23 = sbr.rel (0) target = $region9
    $region8: #{hyper_linear.1} parent=1 // pred_region
      %25 = vsyncadd [#allocation6], 0
      %s26 = sshll.u32 %s1, 4
      %s27 = int_to_ptr.hbm [resolvable:$true] %s26
      %s28 = sshll.u32 [#allocation5], 4
      %s29 = int_to_ptr.vmem [resolvable:$true] %s28
      %34 = dma.hbm_to_vmem [thread:$0]  %s27, 2048, %s29, [#allocation6], 512, 512, 32
    $region9: #{hyper_linear.1} parent=1 // pred_fallthru
      _
    // Predicated region
    $region10: #{hyper_linear.1} parent=1 // pred_check
      _
    $region11: #{hyper_linear.1} parent=1 // pred_check_branch
      %36 = sbr.rel (0) target = $region13
    $region12: #{hyper_linear.1} parent=1 // pred_region
      %38 = vsyncadd [#allocation6], 0
      %s40 = sshll.u32 %s2, 4
      %s41 = int_to_ptr.hbm [resolvable:$true] %s40
      %s42 = sshll.u32 [#allocation7], 4
      %s43 = int_to_ptr.vmem [resolvable:$true] %s42
      %45 = dma.hbm_to_vmem [thread:$0]  %s41, 64, %s43, [#allocation6]
    $region13: #{hyper_linear.1} parent=1 // pred_fallthru
      _
    // Predicated region
    $region14: #{hyper_linear.1} parent=1 // pred_check
      _
    $region15: #{hyper_linear.1} parent=1 // pred_check_branch
      %47 = sbr.rel (0) target = $region17
    $region16: #{hyper_linear.1} parent=1 // pred_region
      %49 = dma.done [#allocation3], 128
    $region17: #{hyper_linear.1} parent=1 // pred_fallthru
      _
    // Predicated region
    $region18: #{hyper_linear.1} parent=1 // pred_check
      _
    $region19: #{hyper_linear.1} parent=1 // pred_check_branch
      %51 = sbr.rel (0) target = $region21
    $region20: #{hyper_linear.1} parent=1 // pred_region
      %53 = dma.done [#allocation6], 2048
    $region21: #{hyper_linear.1} parent=1 // pred_fallthru
      _
    // Predicated region
    $region22: #{hyper_linear.1} parent=1 // pred_check
      _
    $region23: #{hyper_linear.1} parent=1 // pred_check_branch
      %55 = sbr.rel (0) target = $region25
    $region24: #{hyper_linear.1} parent=1 // pred_region
      %57 = dma.done [#allocation6], 64
    $region25: #{hyper_linear.1} parent=1 // pred_fallthru
      _
    %v58 = vld [vmem:[#allocation2] sm:$0xff]
    %v59 = vld [vmem:[#allocation5] sm:$0xff]
    %v60 = vld [vmem:[#allocation5 + $0x8] sm:$0xff]
    %v61 = vld [vmem:[#allocation5 + $0x10] sm:$0xff]
    %v62 = vld [vmem:[#allocation5 + $0x18] sm:$0xff]
    %v63 = vld [vmem:[#allocation5 + $0x20] sm:$0xff]
    %v64 = vld [vmem:[#allocation5 + $0x28] sm:$0xff]
    %v65 = vld [vmem:[#allocation5 + $0x30] sm:$0xff]
    %v66 = vld [vmem:[#allocation5 + $0x38] sm:$0xff]
    %v67 = vld [vmem:[#allocation5 + $0x40] sm:$0xff]
    %v68 = vld [vmem:[#allocation5 + $0x48] sm:$0xff]
    %v69 = vld [vmem:[#allocation5 + $0x50] sm:$0xff]
    %v70 = vld [vmem:[#allocation5 + $0x58] sm:$0xff]
    %v71 = vld [vmem:[#allocation5 + $0x60] sm:$0xff]
    %v72 = vld [vmem:[#allocation5 + $0x68] sm:$0xff]
    %v73 = vld [vmem:[#allocation5 + $0x70] sm:$0xff]
    %v74 = vld [vmem:[#allocation5 + $0x78] sm:$0xff]
    %v75 = vld [vmem:[#allocation7] sm:$0xf]
    %v77 = vperm.slane %v75, 0
    %v78 = vperm.slane %v75, 1
    %v79 = vperm.slane %v75, 2
    %v80 = vperm.slane %v75, 3
    %vm85 = vcmask 261120
    %v87 = vsel %vm85, %v58, 0
    %89 = vmatpush.msra.mxu0 0.0
    %90 = vmatpush.msra.mxu0 0.0
    %91 = vmatpush.msra.mxu0 0.0
    %92 = vmatpush.msra.mxu0 0.0
    %93 = vmatpush.msra.mxu0 0.0
    %94 = vmatpush.msra.mxu0 0.0
    %95 = vmatpush.msra.mxu0 0.0
    %96 = vmatpush.msra.mxu0 0.0
    %97 = vmatpush.msra.mxu0 0.0
    %98 = vmatpush.msra.mxu0 0.0
    %99 = vmatpush.msra.mxu0 0.0
    %100 = vmatpush.msra.mxu0 0.0
    %101 = vmatpush.msra.mxu0 %v71
    %102 = vmatpush.msra.mxu0 %v67
    %103 = vmatpush.msra.mxu0 %v63
    %104 = vmatpush.msra.mxu0 %v59
    %105 = vmatmul.f32.gmra.mxu0 %v87
    %v106 = vpop.f32.mrf.mxu0
    %v107 = vadd.f32 %v77, %v106
    %108 = vdwg.mxu0
    %109 = vmatpush.msra.mxu0 0.0
    %110 = vmatpush.msra.mxu0 0.0
    %111 = vmatpush.msra.mxu0 0.0
    %112 = vmatpush.msra.mxu0 0.0
    %113 = vmatpush.msra.mxu0 0.0
    %114 = vmatpush.msra.mxu0 0.0
    %115 = vmatpush.msra.mxu0 0.0
    %116 = vmatpush.msra.mxu0 0.0
    %117 = vmatpush.msra.mxu0 0.0
    %118 = vmatpush.msra.mxu0 0.0
    %119 = vmatpush.msra.mxu0 0.0
    %120 = vmatpush.msra.mxu0 0.0
    %121 = vmatpush.msra.mxu0 %v72
    %122 = vmatpush.msra.mxu0 %v68
    %123 = vmatpush.msra.mxu0 %v64
    %124 = vmatpush.msra.mxu0 %v60
    %125 = vmatmul.f32.gmra.mxu0 %v87
    %v126 = vpop.f32.mrf.mxu0
    %v127 = vadd.f32 %v78, %v126
    %128 = vdwg.mxu0
    %129 = vmatpush.msra.mxu0 0.0
    %130 = vmatpush.msra.mxu0 0.0
    %131 = vmatpush.msra.mxu0 0.0
    %132 = vmatpush.msra.mxu0 0.0
    %133 = vmatpush.msra.mxu0 0.0
    %134 = vmatpush.msra.mxu0 0.0
    %135 = vmatpush.msra.mxu0 0.0
    %136 = vmatpush.msra.mxu0 0.0
    %137 = vmatpush.msra.mxu0 0.0
    %138 = vmatpush.msra.mxu0 0.0
    %139 = vmatpush.msra.mxu0 0.0
    %140 = vmatpush.msra.mxu0 0.0
    %141 = vmatpush.msra.mxu0 %v73
    %142 = vmatpush.msra.mxu0 %v69
    %143 = vmatpush.msra.mxu0 %v65
    %144 = vmatpush.msra.mxu0 %v61
    %145 = vmatmul.f32.gmra.mxu0 %v87
    %v146 = vpop.f32.mrf.mxu0
    %v147 = vadd.f32 %v79, %v146
    %148 = vdwg.mxu0
    %149 = vmatpush.msra.mxu0 0.0
    %150 = vmatpush.msra.mxu0 0.0
    %151 = vmatpush.msra.mxu0 0.0
    %152 = vmatpush.msra.mxu0 0.0
    %153 = vmatpush.msra.mxu0 0.0
    %154 = vmatpush.msra.mxu0 0.0
    %155 = vmatpush.msra.mxu0 0.0
    %156 = vmatpush.msra.mxu0 0.0
    %157 = vmatpush.msra.mxu0 0.0
    %158 = vmatpush.msra.mxu0 0.0
    %159 = vmatpush.msra.mxu0 0.0
    %160 = vmatpush.msra.mxu0 0.0
    %161 = vmatpush.msra.mxu0 %v74
    %162 = vmatpush.msra.mxu0 %v70
    %163 = vmatpush.msra.mxu0 %v66
    %164 = vmatpush.msra.mxu0 %v62
    %165 = vmatmul.f32.gmra.mxu0 %v87
    %v166 = vpop.f32.mrf.mxu0
    %v167 = vadd.f32 %v80, %v166
    %168 = vdwg.mxu0
    %169 = vst [vmem:[#allocation8] sm:$0xff] %v107
    %170 = vst [vmem:[#allocation8 + $0x8] sm:$0xff] %v127
    %171 = vst [vmem:[#allocation8 + $0x10] sm:$0xff] %v147
    %172 = vst [vmem:[#allocation8 + $0x18] sm:$0xff] %v167
    // Predicated region
    $region26: #{hyper_linear.1} parent=1 // pred_check
      _
    $region27: #{hyper_linear.1} parent=1 // pred_check_branch
      %174 = sbr.rel (0) target = $region29
    $region28: #{hyper_linear.1} parent=1 // pred_region
      %176 = vsyncadd [#allocation4], 0
      %s178 = sshll.u32 [#allocation8], 4
      %s179 = int_to_ptr.vmem [resolvable:$true] %s178
      %s180 = sshll.u32 %s3, 4
      %s181 = int_to_ptr.hbm [resolvable:$true] %s180
      %183 = dma.vmem_to_hbm [thread:$0]  %s179, 512, %s181, [#allocation4]
    $region29: #{hyper_linear.1} parent=1 // pred_fallthru
      _
    // Predicated region
    $region30: #{hyper_linear.1} parent=1 // pred_check
      _
    $region31: #{hyper_linear.1} parent=1 // pred_check_branch
      %185 = sbr.rel (0) target = $region33
    $region32: #{hyper_linear.1} parent=1 // pred_region
      %187 = dma.done [#allocation4], 512
    $region33: #{hyper_linear.1} parent=1 // pred_fallthru
      _
    %188 = vsyncpa [#allocation3], 1
    %189 = vsyncpa [#allocation6], 1
    %190 = vsyncpa [#allocation4], 1

</llo_original>
